<compile_context>
chip_gen: v7x
topology: tpu7x:2x2x1
jax: 0.10.0
libtpu: 0.0.40
codegen_flags: <defaults>
</compile_context>

<pallas_src>
import functools

import jax
import jax.numpy as jnp
from jax import lax
from jax.experimental import pallas as pl
from jax.experimental.pallas import tpu as pltpu


def _round_up(v, m):
    return ((v + m - 1) // m) * m


def _pick_tile(dim, tile, granule):
    """Pick a tile (multiple of `granule`) and the padded dim it divides.

    If the dim fits in one default tile, use the whole (granule-rounded) dim as
    the tile -> minimal padding.  Otherwise split as evenly as possible.
    """
    dim = _round_up(dim, granule)
    tile = max(granule, _round_up(tile, granule))
    if dim <= tile:
        return dim, dim
    nblk = pl.cdiv(dim, tile)
    tile = _round_up(pl.cdiv(dim, nblk), granule)
    return tile, _round_up(dim, tile)


def _hash_u32(x):
    # murmur3-style 32-bit finalizer; pure VPU integer work.
    x = x ^ (x >> 16)
    x = x * jnp.uint32(0x85EBCA6B)
    x = x ^ (x >> 13)
    x = x * jnp.uint32(0xC2B2AE35)
    x = x ^ (x >> 16)
    return x


def _dropout_relu(y, i, j, seed, *, keep_threshold, inv_keep_prob, n_cols):
    """ReLU(Dropout_p(y)) with a per-element counter-hash keep mask."""
    # TODO(synk): dropout mask matches torch's distribution/scaling but is not
    # bit-exact with torch's RNG (counter-based hash, not the HW PRNG).
    tm, tn = y.shape
    row = lax.broadcasted_iota(jnp.int32, (tm, tn), 0) + i * tm
    col = lax.broadcasted_iota(jnp.int32, (tm, tn), 1) + j * tn
    idx = row.astype(jnp.uint32) * jnp.uint32(n_cols) + col.astype(jnp.uint32)
    bits = _hash_u32(idx ^ (seed * jnp.uint32(0x9E3779B9)))
    keep = bits >= jnp.uint32(keep_threshold)
    # keep & (y > 0): ReLU folded into the same select (1/(1-p) > 0).
    return jnp.where(keep & (y > 0.0), y * jnp.float32(inv_keep_prob), 0.0)


# ---------------------------------------------------------------------------
# Fused-K kernels: whole K dim in one MXU dot, 2-D (M, N) grid.
# ---------------------------------------------------------------------------
def _fused_relu_kernel(x_ref, w_ref, b_ref, o_ref):
    y = jnp.dot(x_ref[...], w_ref[...], preferred_element_type=jnp.float32)
    o_ref[...] = jnp.maximum(y + b_ref[...], 0.0).astype(o_ref.dtype)


def _fused_dropout_relu_kernel(seed_ref, x_ref, w_ref, b_ref, o_ref, *,
                               keep_threshold, inv_keep_prob, n_cols):
    i = pl.program_id(0)
    j = pl.program_id(1)
    seed = seed_ref[0].astype(jnp.uint32)
    y = jnp.dot(x_ref[...], w_ref[...], preferred_element_type=jnp.float32)
    y = y + b_ref[...]
    o_ref[...] = _dropout_relu(
        y, i, j, seed, keep_threshold=keep_threshold,
        inv_keep_prob=inv_keep_prob, n_cols=n_cols).astype(o_ref.dtype)


# ---------------------------------------------------------------------------
# Split-K kernels: 3-D (M, N, K) grid with an f32 VMEM accumulator.
# ---------------------------------------------------------------------------
def _split_relu_kernel(x_ref, w_ref, b_ref, o_ref, acc_ref):
    k = pl.program_id(2)

    @pl.when(k == 0)
    def _():
        acc_ref[...] = jnp.zeros_like(acc_ref)

    acc_ref[...] += jnp.dot(
        x_ref[...], w_ref[...], preferred_element_type=jnp.float32)

    @pl.when(k == pl.num_programs(2) - 1)
    def _():
        o_ref[...] = jnp.maximum(acc_ref[...] + b_ref[...], 0.0).astype(o_ref.dtype)


def _split_dropout_relu_kernel(seed_ref, x_ref, w_ref, b_ref, o_ref, acc_ref, *,
                               keep_threshold, inv_keep_prob, n_cols):
    # Grid indices / SMEM scalar read hoisted to kernel top level: never bind
    # pl.program_id inside a pl.when body (breaks interpret-mode lowering).
    i = pl.program_id(0)
    j = pl.program_id(1)
    k = pl.program_id(2)
    seed = seed_ref[0].astype(jnp.uint32)

    @pl.when(k == 0)
    def _():
        acc_ref[...] = jnp.zeros_like(acc_ref)

    acc_ref[...] += jnp.dot(
        x_ref[...], w_ref[...], preferred_element_type=jnp.float32)

    @pl.when(k == pl.num_programs(2) - 1)
    def _():
        y = acc_ref[...] + b_ref[...]
        o_ref[...] = _dropout_relu(
            y, i, j, seed, keep_threshold=keep_threshold,
            inv_keep_prob=inv_keep_prob, n_cols=n_cols).astype(o_ref.dtype)


# ---------------------------------------------------------------------------
# Wrapper
# ---------------------------------------------------------------------------
def old_front_model_forward(x, w_t, b, *, training=False, dropout_rate=0.1,
                            seed=0, tm=512, tn=512, tk=1024,
                            compute_dtype=jnp.bfloat16, max_fused_k=None,
                            out_dtype=None):
    """Forward pass of OldFrontModel.

    x:   (..., in_dim)
    w_t: (in_dim, out_dim)   (nn.Linear weight, pre-transposed)
    b:   (out_dim,)
    returns (..., out_dim)
    """
    lead = x.shape[:-1]
    x = x.reshape(-1, x.shape[-1])
    M, K = x.shape
    K2, N = w_t.shape
    assert K == K2, (K, K2)
    if out_dtype is None:
        out_dtype = x.dtype

    if compute_dtype is not None:
        x = x.astype(compute_dtype)
        w_t = w_t.astype(compute_dtype)
    in_itemsize = jnp.dtype(x.dtype).itemsize
    out_itemsize = jnp.dtype(out_dtype).itemsize
    b = jnp.asarray(b, jnp.float32).reshape(1, N)  # bias stays f32

    # Tile selection: sublane granule 16 for bf16 (packed rows), 8 for f32.
    sub = 16 if in_itemsize < 4 else 8
    tm, Mp = _pick_tile(M, tm, sub)
    tn, Np = _pick_tile(N, tn, 128)

    # v7x megacore: if the parallel grid would be 1x1, halve tn (only when it
    # costs no extra padding) so both TensorCores get a block.
    if Mp // tm == 1 and Np // tn == 1:
        half = tn // 2
        if half >= 128 and half % 128 == 0 and Np % half == 0:
            tn = half
    grid_m, grid_n = Mp // tm, Np // tn

    # Fuse the whole K dim into a single dot when the double-buffered x/W tiles
    # fit a conservative VMEM budget (safe even under v5e's 16 MiB scoped
    # default) -> no accumulator RMW, no per-K-step overhead.
    Kp128 = _round_up(K, 128)
    if max_fused_k is None:
        budget = 12 * 1024 * 1024
        max_fused_k = max(512, (budget // (2 * (tm + tn) * in_itemsize)) // 128 * 128)
    fuse_k = Kp128 <= max_fused_k

    if fuse_k:
        tk = Kp = Kp128
        grid = (grid_m, grid_n)
        dims = ("parallel", "parallel")
    else:
        tk, Kp = _pick_tile(K, tk, 128)
        grid = (grid_m, grid_n, Kp // tk)
        dims = ("parallel", "parallel", "arbitrary")

    # Zero-pad to tile multiples (zeros contribute nothing to the matmul,
    # padded rows/cols are sliced off afterwards).  For repeated calls with the
    # same parameters, pre-pad w_t/b once at parameter-prep time instead.
    if (Mp, Kp) != (M, K):
        x = jnp.pad(x, ((0, Mp - M), (0, Kp - K)))
    if (Kp, Np) != (K, N):
        w_t = jnp.pad(w_t, ((0, Kp - K), (0, Np - N)))
    if Np != N:
        b = jnp.pad(b, ((0, 0), (0, Np - N)))

    # HBM traffic including re-streaming: W is read grid_m times, x grid_n times.
    cost = pl.CostEstimate(
        flops=2 * Mp * Np * Kp,
        transcendentals=0,
        bytes_accessed=(Mp * Kp * in_itemsize) * grid_n
        + (Kp * Np * in_itemsize) * grid_m
        + Np * 4
        + Mp * Np * out_itemsize,
    )
    compiler_params = pltpu.CompilerParams(
        dimension_semantics=dims,
        # Within physical VMEM on every generation (v7x: 64 MiB physical).
        vmem_limit_bytes=32 * 1024 * 1024,
    )
    out_shape = jax.ShapeDtypeStruct((Mp, Np), out_dtype)

    keep_threshold = 0
    inv_keep_prob = 1.0
    if training:
        assert 0.0 <= dropout_rate < 1.0
        keep_threshold = min(int(dropout_rate * (1 << 32)), (1 << 32) - 1)
        inv_keep_prob = 1.0 / (1.0 - dropout_rate)
        seed_arr = jnp.asarray([seed], dtype=jnp.int32)

    if fuse_k:
        if not training:
            out = pl.pallas_call(
                _fused_relu_kernel,
                out_shape=out_shape,
                grid_spec=pltpu.PrefetchScalarGridSpec(
                    num_scalar_prefetch=0,
                    grid=grid,
                    in_specs=[
                        pl.BlockSpec((tm, Kp), lambda i, j: (i, 0)),
                        pl.BlockSpec((Kp, tn), lambda i, j: (0, j)),
                        pl.BlockSpec((1, tn), lambda i, j: (0, j)),
                    ],
                    out_specs=pl.BlockSpec((tm, tn), lambda i, j: (i, j)),
                ),
                compiler_params=compiler_params,
                cost_estimate=cost,
            )(x, w_t, b)
        else:
            kernel = functools.partial(
                _fused_dropout_relu_kernel,
                keep_threshold=keep_threshold,
                inv_keep_prob=inv_keep_prob,
                n_cols=Np,
            )
            out = pl.pallas_call(
                kernel,
                out_shape=out_shape,
                grid_spec=pltpu.PrefetchScalarGridSpec(
                    num_scalar_prefetch=1,
                    grid=grid,
                    in_specs=[
                        pl.BlockSpec((tm, Kp), lambda i, j, s: (i, 0)),
                        pl.BlockSpec((Kp, tn), lambda i, j, s: (0, j)),
                        pl.BlockSpec((1, tn), lambda i, j, s: (0, j)),
                    ],
                    out_specs=pl.BlockSpec((tm, tn), lambda i, j, s: (i, j)),
                ),
                compiler_params=compiler_params,
                cost_estimate=cost,
            )(seed_arr, x, w_t, b)
    else:
        scratch = [pltpu.VMEM((tm, tn), jnp.float32)]
        if not training:
            out = pl.pallas_call(
                _split_relu_kernel,
                out_shape=out_shape,
                grid_spec=pltpu.PrefetchScalarGridSpec(
                    num_scalar_prefetch=0,
                    grid=grid,
                    in_specs=[
                        pl.BlockSpec((tm, tk), lambda i, j, k: (i, k)),
                        pl.BlockSpec((tk, tn), lambda i, j, k: (k, j)),
                        pl.BlockSpec((1, tn), lambda i, j, k: (0, j)),
                    ],
                    out_specs=pl.BlockSpec((tm, tn), lambda i, j, k: (i, j)),
                    scratch_shapes=scratch,
                ),
                compiler_params=compiler_params,
                cost_estimate=cost,
            )(x, w_t, b)
        else:
            kernel = functools.partial(
                _split_dropout_relu_kernel,
                keep_threshold=keep_threshold,
                inv_keep_prob=inv_keep_prob,
                n_cols=Np,
            )
            out = pl.pallas_call(
                kernel,
                out_shape=out_shape,
                grid_spec=pltpu.PrefetchScalarGridSpec(
                    num_scalar_prefetch=1,
                    grid=grid,
                    in_specs=[
                        pl.BlockSpec((tm, tk), lambda i, j, k, s: (i, k)),
                        pl.BlockSpec((tk, tn), lambda i, j, k, s: (k, j)),
                        pl.BlockSpec((1, tn), lambda i, j, k, s: (0, j)),
                    ],
                    out_specs=pl.BlockSpec((tm, tn), lambda i, j, k, s: (i, j)),
                    scratch_shapes=scratch,
                ),
                compiler_params=compiler_params,
                cost_estimate=cost,
            )(seed_arr, x, w_t, b)

    if (Mp, Np) != (M, N):
        out = out[:M, :N]
    return out.reshape(lead + (N,))


def init_params(key, in_dim, out_dim, dtype=jnp.float32):
    """nn.Linear-shaped params: W (out_dim, in_dim), b (out_dim,)."""
    kw, kb = jax.random.split(key)
    bound = 1.0 / (in_dim ** 0.5)
    w = jax.random.uniform(kw, (out_dim, in_dim), dtype, -bound, bound)
    b = jax.random.uniform(kb, (out_dim,), dtype, -bound, bound)
    return w, b


if __name__ == "__main__":
    key = jax.random.PRNGKey(0)
    k_x, k_p, k_x2, k_p2 = jax.random.split(key, 4)

    def ref_eval(x, w_t, b):
        # bf16-rounded inputs + f32 accumulation: matches the kernel's compute dtype.
        xr = x.astype(jnp.bfloat16).astype(jnp.float32)
        wr = w_t.astype(jnp.bfloat16).astype(jnp.float32)
        return jnp.maximum(xr @ wr + b[None, :], 0.0)

    # Shapes implied by the module: x (batch, in_dim) -> (batch, out_dim).
    batch, in_dim, out_dim = 8, 32, 64
    x = jax.random.normal(k_x, (batch, in_dim), jnp.float32)
    w, b = init_params(k_p, in_dim, out_dim)
    w_t = w.T  # (in_dim, out_dim)

    # Eval mode (Dropout = identity), fused-K path.
    y = old_front_model_forward(x, w_t, b, training=False)
    jax.block_until_ready(y)
    assert y.shape == (batch, out_dim)
    assert jnp.allclose(y, ref_eval(x, w_t, b), atol=2e-3, rtol=2e-3)

    # Multi-tile case (N padded to 128 multiple, >1 output tile).
    M2, K2, N2 = 64, 256, 192
    x2 = jax.random.normal(k_x2, (M2, K2), jnp.float32)
    w2, b2 = init_params(k_p2, K2, N2)
    y2 = old_front_model_forward(x2, w2.T, b2, training=False)
    jax.block_until_ready(y2)
    y2_ref = ref_eval(x2, w2.T, b2)
    assert jnp.allclose(y2, y2_ref, atol=5e-3, rtol=5e-3)

    # Forced split-K path: exercises the f32 accumulator + pl.when epilogue.
    y2_split = old_front_model_forward(x2, w2.T, b2, training=False,
                                       max_fused_k=0, tk=128)
    jax.block_until_ready(y2_split)
    assert jnp.allclose(y2_split, y2_ref, atol=5e-3, rtol=5e-3)

    # Training mode: ReLU(Dropout_0.1(x @ W^T + b)).  Every entry is either
    # dropped (0) or the eval activation scaled by 1/(1-p).
    rate = 0.1
    scale = 1.0 / (1.0 - rate)
    y2_tr = old_front_model_forward(x2, w2.T, b2, training=True,
                                    dropout_rate=rate, seed=42)
    jax.block_until_ready(y2_tr)
    ok = (y2_tr == 0) | jnp.isclose(y2_tr, y2 * scale, atol=1e-3, rtol=1e-3)
    assert bool(jnp.all(ok))
    assert bool(jnp.any(y2_tr > 0))

    # Training mode through the forced split-K path.
    y2_tr_s = old_front_model_forward(x2, w2.T, b2, training=True,
                                      dropout_rate=rate, seed=42,
                                      max_fused_k=0, tk=128)
    jax.block_until_ready(y2_tr_s)
    ok = (y2_tr_s == 0) | jnp.isclose(y2_tr_s, y2 * scale, atol=1e-3, rtol=1e-3)
    assert bool(jnp.all(ok))

    print("KERNEL_OK")
</pallas_src>

<mosaic_0001>
module attributes {stable_mosaic.version = 11 : i64} {
  func.func @_fused_relu_kernel(%arg0: i32, %arg1: i32, %arg2: memref<16x128xbf16, #tpu.memory_space<vmem>>, %arg3: memref<128x128xbf16, #tpu.memory_space<vmem>>, %arg4: memref<1x128xf32, #tpu.memory_space<vmem>>, %arg5: memref<16x128xf32, #tpu.memory_space<vmem>>) attributes {dimension_semantics = [#tpu.dimension_semantics<parallel>, #tpu.dimension_semantics<parallel>], iteration_bounds = array<i64: 1, 1>, scalar_prefetch = 0 : i64, scratch_operands = 0 : i64, tpu.core_type = #tpu.core_type<tc>, window_params = [{transform_indices = @transform_0, window_bounds = array<i64: 16, 128>}, {transform_indices = @transform_1, window_bounds = array<i64: 128, 128>}, {transform_indices = @transform_2, window_bounds = array<i64: 1, 128>}, {transform_indices = @transform_3, window_bounds = array<i64: 16, 128>}]} {
    %c0 = arith.constant 0 : index
    %c0_0 = arith.constant 0 : index
    %0 = vector.load %arg2[%c0, %c0_0] : memref<16x128xbf16, #tpu.memory_space<vmem>>, vector<16x128xbf16>
    %c0_1 = arith.constant 0 : index
    %c0_2 = arith.constant 0 : index
    %1 = vector.load %arg3[%c0_1, %c0_2] : memref<128x128xbf16, #tpu.memory_space<vmem>>, vector<128x128xbf16>
    %cst = arith.constant dense<0.000000e+00> : vector<16x128xf32>
    %2 = tpu.matmul %0, %1, %cst {dimension_numbers = #tpu.dot_dimension_numbers<[1], [0], [0], [1], [0, 0, 1, 1], [], []>} : vector<16x128xbf16>, vector<128x128xbf16>, vector<16x128xf32> -> vector<16x128xf32>
    %c0_3 = arith.constant 0 : index
    %c0_4 = arith.constant 0 : index
    %3 = vector.load %arg4[%c0_3, %c0_4] : memref<1x128xf32, #tpu.memory_space<vmem>>, vector<1x128xf32>
    %4 = vector.broadcast %3 : vector<1x128xf32> to vector<16x128xf32>
    %5 = arith.addf %2, %4 : vector<16x128xf32>
    %cst_5 = arith.constant 0.000000e+00 : f32
    %6 = vector.broadcast %cst_5 : f32 to vector<16x128xf32>
    %7 = arith.maximumf %5, %6 : vector<16x128xf32>
    %c0_6 = arith.constant 0 : index
    %c0_7 = arith.constant 0 : index
    %8 = vector.load %arg5[%c0_6, %c0_7] : memref<16x128xf32, #tpu.memory_space<vmem>>, vector<16x128xf32>
    tpu.vector_store %arg5[%c0_6, %c0_7], %7 {strides = array<i32>} : memref<16x128xf32, #tpu.memory_space<vmem>>, vector<16x128xf32>,
    return
  }
  func.func @transform_0(%arg0: i32, %arg1: i32) -> (i32, i32) {
    %c0_i32 = arith.constant 0 : i32
    %c0_i32_0 = arith.constant 0 : i32
    return %arg0, %c0_i32 : i32, i32
  }
  func.func @transform_1(%arg0: i32, %arg1: i32) -> (i32, i32) {
    %c0_i32 = arith.constant 0 : i32
    %c0_i32_0 = arith.constant 0 : i32
    return %c0_i32, %arg1 : i32, i32
  }
  func.func @transform_2(%arg0: i32, %arg1: i32) -> (i32, i32) {
    %c0_i32 = arith.constant 0 : i32
    %c0_i32_0 = arith.constant 0 : i32
    return %c0_i32, %arg1 : i32, i32
  }
  func.func @transform_3(%arg0: i32, %arg1: i32) -> (i32, i32) {
    %c0_i32 = arith.constant 0 : i32
    return %arg0, %arg1 : i32, i32
  }
}

</mosaic_0001>

<llo_original>
// kernel: tpu_custom_call.1
$region0: #{tpu_custom_call.1}
  #allocation0 [shape = 'u32[]', space=smem, size = 0x4, offset = 0x4, fixed_abs, tag = 'smem constant byte address 0x4 - core index']
  #allocation1 [shape = 'u32[144,128]{1,0:T(1,128)}', space=vmem, size = 0x12000, scoped, tag = 'internal scratch']
  %s0 = inlined_call_operand.hbm [shape: bf16[16,128], index: 0, kind: input, shape index: {}]
  %s1 = inlined_call_operand.hbm [shape: bf16[128,128], index: 1, kind: input, shape index: {}]
  %s2 = inlined_call_operand.vmem [shape: f32[1,128], index: 2, kind: input, shape index: {}]
  %s3 = inlined_call_operand.hbm [shape: f32[16,128], index: 3, kind: output, shape index: {}]
  %s4 = sld [smem:[#allocation0]]
  $region30: #{tpu_custom_call.1} parent=0
    _
  %s6 = ssub.s32 1, %s4
  %s7 = scalar_select 0, %s6, %s4
  $region1: #{tpu_custom_call.1} parent=0
    #allocation2 [shape = 'u8[4096]{0}', space=vmem, size = 0x1000, scoped, tag = 'input window, operand 0, single buffered']
    #allocation3 [shape = 's32[1]{0}', space=sflag, size = 0x4, scoped, tag = 'scoped memory for tpu_custom_call.1']
    #allocation4 [shape = 's32[1]{0}', space=sflag, size = 0x4, scoped, tag = 'scoped memory for tpu_custom_call.1']
    #allocation5 [shape = 'u8[32768]{0}', space=vmem, size = 0x8000, scoped, tag = 'input window, operand 1, single buffered']
    #allocation6 [shape = 's32[1]{0}', space=sflag, size = 0x4, scoped, tag = 'scoped memory for tpu_custom_call.1']
    #allocation7 [shape = 'u8[8192]{0}', space=vmem, size = 0x2000, scoped, tag = 'output window, operand 0, single buffered']
    %8 = vsyncpa [#allocation3], 0
    %9 = vsyncpa [#allocation6], 0
    %10 = vsyncpa [#allocation4], 0
    // Predicated region
    $region2: #{tpu_custom_call.1} parent=1 // pred_check
      _
    $region3: #{tpu_custom_call.1} parent=1 // pred_check_branch
      %12 = sbr.rel (0) target = $region5
    $region4: #{tpu_custom_call.1} parent=1 // pred_region
      %s14 = ssub.s32 128, 128
      %15 = vsyncadd [#allocation3], %s14
      %s16 = sshll.u32 [#allocation2], 4
      %s17 = int_to_ptr.vmem [resolvable:$true] %s16
      %22 = dma.hbm_to_vmem [thread:$0]  %s0, 128, %s17, [#allocation3], 64, 64, 4
    $region5: #{tpu_custom_call.1} parent=1 // pred_fallthru
      _
    // Predicated region
    $region6: #{tpu_custom_call.1} parent=1 // pred_check
      _
    $region7: #{tpu_custom_call.1} parent=1 // pred_check_branch
      %24 = sbr.rel (0) target = $region9
    $region8: #{tpu_custom_call.1} parent=1 // pred_region
      %s26 = ssub.s32 1024, 1024
      %27 = vsyncadd [#allocation6], %s26
      %s28 = sshll.u32 [#allocation5], 4
      %s29 = int_to_ptr.vmem [resolvable:$true] %s28
      %34 = dma.hbm_to_vmem [thread:$0]  %s1, 1024, %s29, [#allocation6], 64, 64, 4
    $region9: #{tpu_custom_call.1} parent=1 // pred_fallthru
      _
    // Predicated region
    $region10: #{tpu_custom_call.1} parent=1 // pred_check
      _
    $region11: #{tpu_custom_call.1} parent=1 // pred_check_branch
      %36 = sbr.rel (0) target = $region13
    $region12: #{tpu_custom_call.1} parent=1 // pred_region
      _
    $region13: #{tpu_custom_call.1} parent=1 // pred_fallthru
      _
    // Predicated region
    $region14: #{tpu_custom_call.1} parent=1 // pred_check
      _
    $region15: #{tpu_custom_call.1} parent=1 // pred_check_branch
      %38 = sbr.rel (0) target = $region17
    $region16: #{tpu_custom_call.1} parent=1 // pred_region
      %39 = dma.done [#allocation3], 128
    $region17: #{tpu_custom_call.1} parent=1 // pred_fallthru
      _
    // Predicated region
    $region18: #{tpu_custom_call.1} parent=1 // pred_check
      _
    $region19: #{tpu_custom_call.1} parent=1 // pred_check_branch
      %41 = sbr.rel (0) target = $region21
    $region20: #{tpu_custom_call.1} parent=1 // pred_region
      %42 = dma.done [#allocation6], 1024
    $region21: #{tpu_custom_call.1} parent=1 // pred_fallthru
      _
    %v44 = vld [vmem:[#allocation2] sm:$0xf]
    %v45 = vld [vmem:[#allocation2 + $0x4] sm:$0xf]
    %v46 = vld [vmem:[#allocation5] sm:$0xf]
    %v47 = vld [vmem:[#allocation5 + $0x4] sm:$0xf]
    %v48 = vld [vmem:[#allocation5 + $0x8] sm:$0xf]
    %v49 = vld [vmem:[#allocation5 + $0xc] sm:$0xf]
    %v50 = vld [vmem:[#allocation5 + $0x10] sm:$0xf]
    %v51 = vld [vmem:[#allocation5 + $0x14] sm:$0xf]
    %v52 = vld [vmem:[#allocation5 + $0x18] sm:$0xf]
    %v53 = vld [vmem:[#allocation5 + $0x1c] sm:$0xf]
    %v54 = vld [vmem:[#allocation5 + $0x20] sm:$0xf]
    %v55 = vld [vmem:[#allocation5 + $0x24] sm:$0xf]
    %v56 = vld [vmem:[#allocation5 + $0x28] sm:$0xf]
    %v57 = vld [vmem:[#allocation5 + $0x2c] sm:$0xf]
    %v58 = vld [vmem:[#allocation5 + $0x30] sm:$0xf]
    %v59 = vld [vmem:[#allocation5 + $0x34] sm:$0xf]
    %v60 = vld [vmem:[#allocation5 + $0x38] sm:$0xf]
    %v61 = vld [vmem:[#allocation5 + $0x3c] sm:$0xf]
    %v62 = vld [vmem:[%s2] sm:$0x1]
    %v64 = vlaneseq
    %v65 = vshrl.u32 %v64, 7
    %v66 = vsub.s32 0, %v65
    %v67 = vrot.slane %v62, %v66
    %v71 = vunpack.c.l.b16 %v44
    %v72 = vunpack.c.l.b16 %v45
    %v73 = vpack.c.b16 %v72, %v71
    %v91 = vunpack.c.l.b16 %v46
    %v92 = vunpack.c.l.b16 %v47
    %v93 = vunpack.c.l.b16 %v48
    %v94 = vunpack.c.l.b16 %v49
    %v95 = vunpack.c.l.b16 %v50
    %v96 = vunpack.c.l.b16 %v51
    %v97 = vunpack.c.l.b16 %v52
    %v98 = vunpack.c.l.b16 %v53
    %v99 = vunpack.c.l.b16 %v54
    %v100 = vunpack.c.l.b16 %v55
    %v101 = vunpack.c.l.b16 %v56
    %v102 = vunpack.c.l.b16 %v57
    %v103 = vunpack.c.l.b16 %v58
    %v104 = vunpack.c.l.b16 %v59
    %v105 = vunpack.c.l.b16 %v60
    %v106 = vunpack.c.l.b16 %v61
    %v107 = vpack.c.b16 %v92, %v91
    %v108 = vpack.c.b16 %v94, %v93
    %v109 = vpack.c.b16 %v96, %v95
    %v110 = vpack.c.b16 %v98, %v97
    %v111 = vpack.c.b16 %v100, %v99
    %v112 = vpack.c.b16 %v102, %v101
    %v113 = vpack.c.b16 %v104, %v103
    %v114 = vpack.c.b16 %v106, %v105
    %123 = vmatprep.subr.bf16.mxu0 0
    %124 = vmatpush1.bf16.msra.mxu0 %v107
    %125 = vmatprep.subr.bf16.mxu0 0
    %126 = vmatpush1.bf16.msra.mxu0 %v108
    %127 = vmatprep.subr.bf16.mxu0 0
    %128 = vmatpush1.bf16.msra.mxu0 %v109
    %129 = vmatprep.subr.bf16.mxu0 0
    %130 = vmatpush1.bf16.msra.mxu0 %v110
    %131 = vmatprep.subr.bf16.mxu0 0
    %132 = vmatpush1.bf16.msra.mxu0 %v111
    %133 = vmatprep.subr.bf16.mxu0 0
    %134 = vmatpush1.bf16.msra.mxu0 %v112
    %135 = vmatprep.subr.bf16.mxu0 0
    %136 = vmatpush1.bf16.msra.mxu0 %v113
    %137 = vmatprep.subr.bf16.mxu0 0
    %138 = vmatpush1.bf16.msra.mxu0 %v114
    %139 = vmatprep.subr.bf16.mxu0 0
    %140 = vmatpush1.bf16.msra.mxu0 0
    %141 = vmatprep.subr.bf16.mxu0 0
    %142 = vmatpush1.bf16.msra.mxu0 0
    %143 = vmatprep.subr.bf16.mxu0 0
    %144 = vmatpush1.bf16.msra.mxu0 0
    %145 = vmatprep.subr.bf16.mxu0 0
    %146 = vmatpush1.bf16.msra.mxu0 0
    %147 = vmatprep.subr.bf16.mxu0 0
    %148 = vmatpush1.bf16.msra.mxu0 0
    %149 = vmatprep.subr.bf16.mxu0 0
    %150 = vmatpush1.bf16.msra.mxu0 0
    %151 = vmatprep.subr.bf16.mxu0 0
    %152 = vmatpush1.bf16.msra.mxu0 0
    %153 = vmatprep.subr.bf16.mxu0 0
    %154 = vmatpush1.bf16.msra.mxu0 0
    %155 = vmatprep.mubr.bf16.mxu0 0
    %156 = vmatmul.mubr.bf16.gmra.mrb[0].mxu0 %v73
    %v157 = vpop.f32.mrb[0].mxu0
    %v158 = vadd.f32 %v67, %v157
    %v159 = vpop.f32.mrb[0].mxu0
    %v160 = vpop.f32.mrb[0].mxu0
    %v161 = vadd.f32 %v67, %v160
    %v162 = vpop.f32.mrb[0].mxu0
    %163 = vdwg.mxu0
    %v164 = vmax.f32 %v158, 0.0
    %v165 = vmax.f32 %v161, 0.0
    %166 = vst [vmem:[#allocation7] sm:$0xff] %v164
    %167 = vst [vmem:[#allocation7 + $0x8] sm:$0xff] %v165
    // Predicated region
    $region22: #{tpu_custom_call.1} parent=1 // pred_check
      _
    $region23: #{tpu_custom_call.1} parent=1 // pred_check_branch
      %169 = sbr.rel (0) target = $region25
    $region24: #{tpu_custom_call.1} parent=1 // pred_region
      %s171 = ssub.s32 256, 256
      %172 = vsyncadd [#allocation4], %s171
      %s173 = sshll.u32 [#allocation7], 4
      %s174 = int_to_ptr.vmem [resolvable:$true] %s173
      %179 = dma.vmem_to_hbm [thread:$0]  %s174, 256, %s3, [#allocation4], 128, 128, 8
    $region25: #{tpu_custom_call.1} parent=1 // pred_fallthru
      _
    // Predicated region
    $region26: #{tpu_custom_call.1} parent=1 // pred_check
      _
    $region27: #{tpu_custom_call.1} parent=1 // pred_check_branch
      %181 = sbr.rel (0) target = $region29
    $region28: #{tpu_custom_call.1} parent=1 // pred_region
      %182 = dma.done [#allocation4], 256
    $region29: #{tpu_custom_call.1} parent=1 // pred_fallthru
      _
    %183 = vsyncpa [#allocation3], 1
    %184 = vsyncpa [#allocation6], 1
    %185 = vsyncpa [#allocation4], 1

</llo_original>
